<compile_context>
chip_gen: v6e
topology: v6e:2x2x1
jax: 0.10.0
libtpu: 0.0.40
codegen_flags: <defaults>
</compile_context>

<pallas_src>
import jax
import jax.numpy as jnp
from jax.experimental import pallas as pl
from jax.experimental.pallas import tpu as pltpu


def _round_up(x, m):
    return ((x + m - 1) // m) * m


def _vmem_capacity_bytes():
    """Trace-time VMEM capacity query with a conservative (v7x-safe) fallback."""
    try:
        cap = int(pltpu.get_tpu_info().vmem_capacity_bytes)
        if cap > 0:
            return cap
    except Exception:
        pass
    return 64 << 20  # v7x per-TC physical VMEM; safe lower bound on every gen


def _patch_merge_kernel(a_ref, w_ref, o_ref):
    # a_ref: (TM, K) activation tile; w_ref: (K, BN) pre-transposed weight.
    # MXU-native matmul, f32 accumulation, cast to the output dtype on store.
    o_ref[...] = jnp.dot(
        a_ref[...], w_ref[...], preferred_element_type=jnp.float32
    ).astype(o_ref.dtype)


def _plan_tiles(M, K, N_pad, a_isz, w_isz, o_isz, vmem_cap):
    """Pick (TM, BN, grid_n, weight_buffer_count) for this generation's VMEM."""
    budget = int(vmem_cap * 0.50)          # headroom for Mosaic scratch / spills

    # N tiling: bound the resident weight (matters for large C on v7x @ 64 MiB).
    w_budget = min(int(vmem_cap * 0.30), 20 << 20)
    BN = N_pad
    if K * N_pad * w_isz > w_budget:
        BN = max(128, (w_budget // (K * w_isz) // 128) * 128)
        BN = min(BN, N_pad)
    grid_n = pl.cdiv(N_pad, BN)
    # Constant weight block (grid_n == 1): single buffer -- it is fetched once.
    # N-chunked weight: keep double buffering so next chunk's DMA overlaps.
    w_bufs = 1 if grid_n == 1 else 2

    # M tiling: biggest tile that fits the remaining budget (HBM-bound kernel,
    # big tiles amortize the ~0.35 us/step overhead toward the roofline).
    w_bytes = w_bufs * K * BN * w_isz
    per_row = 2 * K * a_isz + 2 * BN * o_isz          # dbl-buffered A + out rows
    avail = max(budget - w_bytes, 32 * per_row)
    tm_cap = 4096 if K <= 1024 else 2048
    TM = min(avail // per_row, tm_cap)
    TM = max(16, (TM // 16) * 16)                     # sublane-aligned (f32 & bf16)

    # Keep >= 4 M-tiles when M allows it: the M axis feeds megacore sharding
    # (v7x has 2 TCs) and the software pipeline needs >1 step to overlap.
    if M >= 4 * 16:
        TM = min(TM, _round_up(pl.cdiv(M, 4), 16))
    TM = min(TM, _round_up(M, 16))                    # don't over-allocate tiny M
    return int(TM), int(BN), int(grid_n), int(w_bufs)


def patch_merging_forward(x, weight, *, cast_to_bf16=False):
    """
    Patch_Merging forward:
        x (B, L, C) -> reshape (B, L//4, 4C) -> Linear(4C -> 2C, bias=False)

    x:      (B, L, C)
    weight: (2C, 4C)  -- PyTorch nn.Linear (out_features, in_features) layout
    cast_to_bf16: cast f32 operands to bf16 before the kernel (halves HBM
        traffic; bf16-native MXU on v5e).  Accumulation is f32 either way.
    returns (B, L // 4, 2C) in the (possibly cast) input dtype.
    """
    B, L, C = x.shape
    assert L % 4 == 0, "seq_len must be divisible by 4"
    K = 4 * C
    N = 2 * C
    M = B * (L // 4)
    assert weight.shape == (N, K)

    if cast_to_bf16 and x.dtype == jnp.float32:
        x = x.astype(jnp.bfloat16)
        weight = weight.astype(jnp.bfloat16)

    # Lane-dense output: pad N up to a multiple of 128 unconditionally so the
    # store path uses full unmasked vst's (biggest measured store-side lever).
    N_pad = _round_up(N, 128)

    # One-time wrapper-side transpose to (K, N_pad): the kernel then contracts
    # (TM,K)@(K,BN) natively on the MXU with no in-kernel weight transpose.
    w = weight.T
    if N_pad != N:
        w = jnp.pad(w, ((0, 0), (0, N_pad - N)))

    a = x.reshape(M, K)

    a_isz = jnp.dtype(a.dtype).itemsize
    w_isz = jnp.dtype(w.dtype).itemsize
    o_isz = a_isz
    vmem_cap = _vmem_capacity_bytes()
    TM, BN, grid_n, w_bufs = _plan_tiles(M, K, N_pad, a_isz, w_isz, o_isz, vmem_cap)
    grid_m = pl.cdiv(M, TM)

    # Explicit VMEM limit with headroom, clamped below physical capacity
    # (v7x: 64 MiB; v5e/v6e: 128 MiB).
    est = 2 * TM * K * a_isz + 2 * TM * BN * o_isz + w_bufs * K * BN * w_isz
    vmem_limit = int(min(int(vmem_cap * 0.85), max(32 << 20, int(est * 1.25))))

    cost = pl.CostEstimate(
        flops=2 * M * K * N_pad,
        transcendentals=0,
        bytes_accessed=M * K * a_isz + K * N_pad * w_isz + M * N_pad * o_isz,
    )

    out = pl.pallas_call(
        _patch_merge_kernel,
        out_shape=jax.ShapeDtypeStruct((M, N_pad), a.dtype),
        grid_spec=pl.GridSpec(
            grid=(grid_m, grid_n),
            in_specs=[
                # A: streamed over M, re-used across the N axis.
                pl.BlockSpec((TM, K), lambda i, j: (i, 0)),
                # W: resident (single-buffered) or N-chunked (double-buffered).
                pl.BlockSpec(
                    (K, BN),
                    lambda i, j: (0, j),
                    pipeline_mode=pl.Buffered(w_bufs),
                ),
            ],
            out_specs=pl.BlockSpec((TM, BN), lambda i, j: (i, j)),
        ),
        compiler_params=pltpu.CompilerParams(
            dimension_semantics=("parallel", "parallel"),
            vmem_limit_bytes=vmem_limit,
        ),
        cost_estimate=cost,
    )(a, w)

    if N_pad != N:
        # TODO(synk): in a fused model, let the consumer read the padded
        # (M, N_pad) slab directly instead of materializing this trimmed copy.
        out = out[:, :N]
    return out.reshape(B, L // 4, N)


if __name__ == "__main__":
    # Small shapes consistent with the module: B=2, seq_len=16, embed_dim=32.
    B, L, C = 2, 16, 32

    key = jax.random.PRNGKey(0)
    kx, kw = jax.random.split(key)

    x = jax.random.normal(kx, (B, L, C), dtype=jnp.float32)
    # nn.Linear(embed_dim*4, embed_dim*2, bias=False) weight, (out, in) layout.
    weight = jax.random.normal(kw, (2 * C, 4 * C), dtype=jnp.float32) * 0.02

    fwd = jax.jit(patch_merging_forward, static_argnames=("cast_to_bf16",))

    # f32 path -- exact semantics of the PyTorch module.
    out = jax.block_until_ready(fwd(x, weight))
    ref = x.reshape(B, L // 4, 4 * C) @ weight.T
    assert out.shape == (B, L // 4, 2 * C)
    assert jnp.allclose(out, ref, atol=1e-4, rtol=1e-4)

    # bf16 inputs (halves HBM traffic; f32 accumulation inside the kernel).
    out_bf16 = jax.block_until_ready(
        fwd(x.astype(jnp.bfloat16), weight.astype(jnp.bfloat16))
    )
    assert out_bf16.shape == (B, L // 4, 2 * C)
    assert jnp.allclose(out_bf16.astype(jnp.float32), ref, atol=1e-1, rtol=1e-1)

    # f32 inputs with the bf16-cast flag (v5e-friendly fast path).
    out_cast = jax.block_until_ready(fwd(x, weight, cast_to_bf16=True))
    assert out_cast.shape == (B, L // 4, 2 * C)
    assert jnp.allclose(out_cast.astype(jnp.float32), ref, atol=1e-1, rtol=1e-1)

    print("KERNEL_OK")
</pallas_src>

<mosaic_0001>
module attributes {stable_mosaic.version = 11 : i64} {
  func.func @_patch_merge_kernel(%arg0: i32, %arg1: i32, %arg2: memref<16x128xf32, #tpu.memory_space<vmem>>, %arg3: memref<128x128xf32, #tpu.memory_space<vmem>>, %arg4: memref<16x128xf32, #tpu.memory_space<vmem>>) attributes {dimension_semantics = [#tpu.dimension_semantics<parallel>, #tpu.dimension_semantics<parallel>], iteration_bounds = array<i64: 1, 1>, scalar_prefetch = 0 : i64, scratch_operands = 0 : i64, tpu.core_type = #tpu.core_type<tc>, window_params = [{transform_indices = @transform_0, window_bounds = array<i64: 16, 128>}, {pipeline_mode = #tpu.pipeline_mode<synchronous>, transform_indices = @transform_1, window_bounds = array<i64: 128, 128>}, {transform_indices = @transform_2, window_bounds = array<i64: 16, 128>}]} {
    %c0 = arith.constant 0 : index
    %c0_0 = arith.constant 0 : index
    %0 = vector.load %arg2[%c0, %c0_0] : memref<16x128xf32, #tpu.memory_space<vmem>>, vector<16x128xf32>
    %c0_1 = arith.constant 0 : index
    %c0_2 = arith.constant 0 : index
    %1 = vector.load %arg3[%c0_1, %c0_2] : memref<128x128xf32, #tpu.memory_space<vmem>>, vector<128x128xf32>
    %cst = arith.constant dense<0.000000e+00> : vector<16x128xf32>
    %2 = tpu.matmul %0, %1, %cst {dimension_numbers = #tpu.dot_dimension_numbers<[1], [0], [0], [1], [0, 0, 1, 1], [], []>} : vector<16x128xf32>, vector<128x128xf32>, vector<16x128xf32> -> vector<16x128xf32>
    %c0_3 = arith.constant 0 : index
    %c0_4 = arith.constant 0 : index
    %3 = vector.load %arg4[%c0_3, %c0_4] : memref<16x128xf32, #tpu.memory_space<vmem>>, vector<16x128xf32>
    tpu.vector_store %arg4[%c0_3, %c0_4], %2 {strides = array<i32>} : memref<16x128xf32, #tpu.memory_space<vmem>>, vector<16x128xf32>,
    return
  }
  func.func @transform_0(%arg0: i32, %arg1: i32) -> (i32, i32) {
    %c0_i32 = arith.constant 0 : i32
    %c0_i32_0 = arith.constant 0 : i32
    return %arg0, %c0_i32 : i32, i32
  }
  func.func @transform_1(%arg0: i32, %arg1: i32) -> (i32, i32) {
    %c0_i32 = arith.constant 0 : i32
    %c0_i32_0 = arith.constant 0 : i32
    return %c0_i32, %arg1 : i32, i32
  }
  func.func @transform_2(%arg0: i32, %arg1: i32) -> (i32, i32) {
    %c0_i32 = arith.constant 0 : i32
    return %arg0, %arg1 : i32, i32
  }
}

</mosaic_0001>

<llo_original>
// kernel: patch_merging_forward.1
$region0: #{patch_merging_forward.1}
  #allocation0 [shape = 'u32[]', space=smem, size = 0x4, offset = 0x4, fixed_abs, tag = 'smem constant byte address 0x4 - core index']
  #allocation1 [shape = 'u32[144,128]{1,0:T(1,128)}', space=vmem, size = 0x12000, scoped, tag = 'internal scratch']
  %s0 = inlined_call_operand.vmem [shape: f32[8,128], index: 0, kind: input, shape index: {}]
  %s1 = inlined_call_operand.vmem [shape: f32[128,128], index: 1, kind: input, shape index: {}]
  %s2 = inlined_call_operand.hbm [shape: f32[8,128], index: 2, kind: output, shape index: {}]
  %s3 = sld [smem:[#allocation0]]
  $region18: #{patch_merging_forward.1} parent=0
    _
  %s5 = ssub.s32 1, %s3
  %s6 = scalar_select 0, %s5, %s3
  $region1: #{patch_merging_forward.1} parent=0
    #allocation2 [shape = 'u8[8192]{0}', space=vmem, size = 0x2000, scoped, tag = 'output window, operand 0, single buffered']
    #allocation3 [shape = 's32[1]{0}', space=sflag, size = 0x4, scoped, tag = 'scoped memory for patch_merging_forward.1']
    %7 = vsyncpa [#allocation3], 0
    // Predicated region
    $region2: #{patch_merging_forward.1} parent=1 // pred_check
      _
    $region3: #{patch_merging_forward.1} parent=1 // pred_check_branch
      %9 = sbr.rel (0) target = $region5
    $region4: #{patch_merging_forward.1} parent=1 // pred_region
      _
    $region5: #{patch_merging_forward.1} parent=1 // pred_fallthru
      _
    // Predicated region
    $region6: #{patch_merging_forward.1} parent=1 // pred_check
      _
    $region7: #{patch_merging_forward.1} parent=1 // pred_check_branch
      %11 = sbr.rel (0) target = $region9
    $region8: #{patch_merging_forward.1} parent=1 // pred_region
      _
    $region9: #{patch_merging_forward.1} parent=1 // pred_fallthru
      _
    %v12 = vld [vmem:[%s0] sm:$0xff]
    %v13 = vld [vmem:[%s0 + $0x8] sm:$0xff]
    %v14 = vld [vmem:[%s1] sm:$0xff]
    %v15 = vld [vmem:[%s1 + $0x8] sm:$0xff]
    %v16 = vld [vmem:[%s1 + $0x10] sm:$0xff]
    %v17 = vld [vmem:[%s1 + $0x18] sm:$0xff]
    %v18 = vld [vmem:[%s1 + $0x20] sm:$0xff]
    %v19 = vld [vmem:[%s1 + $0x28] sm:$0xff]
    %v20 = vld [vmem:[%s1 + $0x30] sm:$0xff]
    %v21 = vld [vmem:[%s1 + $0x38] sm:$0xff]
    %v22 = vld [vmem:[%s1 + $0x40] sm:$0xff]
    %v23 = vld [vmem:[%s1 + $0x48] sm:$0xff]
    %v24 = vld [vmem:[%s1 + $0x50] sm:$0xff]
    %v25 = vld [vmem:[%s1 + $0x58] sm:$0xff]
    %v26 = vld [vmem:[%s1 + $0x60] sm:$0xff]
    %v27 = vld [vmem:[%s1 + $0x68] sm:$0xff]
    %v28 = vld [vmem:[%s1 + $0x70] sm:$0xff]
    %v29 = vld [vmem:[%s1 + $0x78] sm:$0xff]
    %30 = vmatprep.subr.mxu0 0.0
    %31 = vmatpush1.msra.mxu0 %v29
    %32 = vmatprep.subr.mxu0 0.0
    %33 = vmatpush1.msra.mxu0 %v28
    %34 = vmatprep.subr.mxu0 0.0
    %35 = vmatpush1.msra.mxu0 %v27
    %36 = vmatprep.subr.mxu0 0.0
    %37 = vmatpush1.msra.mxu0 %v26
    %38 = vmatprep.subr.mxu0 0.0
    %39 = vmatpush1.msra.mxu0 %v25
    %40 = vmatprep.subr.mxu0 0.0
    %41 = vmatpush1.msra.mxu0 %v24
    %42 = vmatprep.subr.mxu0 0.0
    %43 = vmatpush1.msra.mxu0 %v23
    %44 = vmatprep.subr.mxu0 0.0
    %45 = vmatpush1.msra.mxu0 %v22
    %46 = vmatprep.subr.mxu0 0.0
    %47 = vmatpush1.msra.mxu0 %v21
    %48 = vmatprep.subr.mxu0 0.0
    %49 = vmatpush1.msra.mxu0 %v20
    %50 = vmatprep.subr.mxu0 0.0
    %51 = vmatpush1.msra.mxu0 %v19
    %52 = vmatprep.subr.mxu0 0.0
    %53 = vmatpush1.msra.mxu0 %v18
    %54 = vmatprep.subr.mxu0 0.0
    %55 = vmatpush1.msra.mxu0 %v17
    %56 = vmatprep.subr.mxu0 0.0
    %57 = vmatpush1.msra.mxu0 %v16
    %58 = vmatprep.subr.mxu0 0.0
    %59 = vmatpush1.msra.mxu0 %v15
    %60 = vmatprep.subr.mxu0 0.0
    %61 = vmatpush1.msra.mxu0 %v14
    %62 = vmatprep.subr.mxu0 0.0
    %63 = vmatpush2.msra.mxu0 0.0
    %64 = vmatprep.subr.mxu0 0.0
    %65 = vmatpush2.msra.mxu0 0.0
    %66 = vmatprep.subr.mxu0 0.0
    %67 = vmatpush2.msra.mxu0 0.0
    %68 = vmatprep.subr.mxu0 0.0
    %69 = vmatpush2.msra.mxu0 0.0
    %70 = vmatprep.subr.mxu0 0.0
    %71 = vmatpush2.msra.mxu0 0.0
    %72 = vmatprep.subr.mxu0 0.0
    %73 = vmatpush2.msra.mxu0 0.0
    %74 = vmatprep.subr.mxu0 0.0
    %75 = vmatpush2.msra.mxu0 0.0
    %76 = vmatprep.subr.mxu0 0.0
    %77 = vmatpush2.msra.mxu0 0.0
    %78 = vmatprep.subr.mxu0 0.0
    %79 = vmatpush2.msra.mxu0 0.0
    %80 = vmatprep.subr.mxu0 0.0
    %81 = vmatpush2.msra.mxu0 0.0
    %82 = vmatprep.subr.mxu0 0.0
    %83 = vmatpush2.msra.mxu0 0.0
    %84 = vmatprep.subr.mxu0 0.0
    %85 = vmatpush2.msra.mxu0 0.0
    %86 = vmatprep.subr.mxu0 0.0
    %87 = vmatpush2.msra.mxu0 0.0
    %88 = vmatprep.subr.mxu0 0.0
    %89 = vmatpush2.msra.mxu0 0.0
    %90 = vmatprep.subr.mxu0 0.0
    %91 = vmatpush2.msra.mxu0 0.0
    %92 = vmatprep.subr.mxu0 0.0
    %93 = vmatpush2.msra.mxu0 0.0
    %94 = vmatprep.mubr.f32.mxu0 0.0
    %95 = vmatmul.mubr.f32.gmra.mxu0 %v12
    %v96 = vpop.f32.mrf.mxu0
    %v97 = vadd.f32 0.0, %v96
    %v98 = vpop.f32.mrf.mxu0
    %99 = vmatprep.mubr.f32.mxu0 0.0
    %100 = vmatmul.mubr.f32.gmra.mxu0 %v13
    %v101 = vpop.f32.mrf.mxu0
    %v102 = vadd.f32 0.0, %v101
    %v103 = vpop.f32.mrf.mxu0
    %104 = vdwg.mxu0
    %105 = vst [vmem:[#allocation2] sm:$0xff] %v97
    %106 = vst [vmem:[#allocation2 + $0x8] sm:$0xff] %v102
    // Predicated region
    $region10: #{patch_merging_forward.1} parent=1 // pred_check
      _
    $region11: #{patch_merging_forward.1} parent=1 // pred_check_branch
      %108 = sbr.rel (0) target = $region13
    $region12: #{patch_merging_forward.1} parent=1 // pred_region
      %s110 = ssub.s32 256, 128
      %111 = vsyncadd [#allocation3], %s110
      %s112 = sshll.u32 [#allocation2], 4
      %s113 = int_to_ptr.vmem [resolvable:$true] %s112
      %118 = dma.vmem_to_hbm [thread:$0]  %s113, 128, %s2, [#allocation3], 128, 128, 8
    $region13: #{patch_merging_forward.1} parent=1 // pred_fallthru
      _
    // Predicated region
    $region14: #{patch_merging_forward.1} parent=1 // pred_check
      _
    $region15: #{patch_merging_forward.1} parent=1 // pred_check_branch
      %120 = sbr.rel (0) target = $region17
    $region16: #{patch_merging_forward.1} parent=1 // pred_region
      %121 = dma.done [#allocation3], 256
    $region17: #{patch_merging_forward.1} parent=1 // pred_fallthru
      _
    %122 = vsyncpa [#allocation3], 1

</llo_original>
